<compile_context>
chip_gen: v7x
topology: tpu7x:2x2x1
jax: 0.10.0
libtpu: 0.0.40
codegen_flags: <defaults>
</compile_context>

<pallas_src>
import functools

import jax
import jax.numpy as jnp
from jax import lax
from jax.experimental import pallas as pl
from jax.experimental.pallas import tpu as pltpu

NEG_SLOPE = 0.1
BN_EPS = 1e-5

_VMEM_BUDGET = 24 << 20       # stay under the 32 MiB default scoped limit on all generations
_STEP_FAT_BYTES = 256 << 10   # per-step HBM traffic above which splitting the grid pays off


def _leaky(x):
    return jnp.where(x > 0, x, NEG_SLOPE * x)


def _residual_block_kernel(x_ref, w1_ref, w2_ref, bn_ref, mask_ref, out_ref, *, Nb, H, W):
    """One grid step processes Nb images as a single (C, Nb*H*W) lane slab.

    x_ref    : (Nb, C, M)   input, channels on sublanes, spatial on lanes
    w1/w2    : (C, 9*C)     conv weights, row c_out, column (kh*3+kw)*C + c_in
    bn_ref   : (C, 4)       packed BatchNorm affine: [s1, b1, s2, b2]
    mask_ref : (9, Nb*M)    per-tap validity masks (1.0 valid / 0.0 "same"-padding)
    out_ref  : (Nb, C, M)
    """
    C = w1_ref.shape[0]
    M = H * W
    L = Nb * M

    w1 = w1_ref[...]
    w2 = w2_ref[...]
    bn = bn_ref[...]
    s1, b1, s2, b2 = bn[:, 0:1], bn[:, 1:2], bn[:, 2:3], bn[:, 3:4]
    mask = mask_ref[...]

    # Batch -> lanes slab (C, Nb*M).  Lane-axis concat of 128-multiple tiles: no relayout.
    if Nb == 1:
        x = x_ref[0]
    else:
        x = jnp.concatenate([x_ref[n] for n in range(Nb)], axis=1)

    # Hoisted once and shared by both convs (JAX does not CSE broadcast_in_dim).
    tap_masks = [jnp.broadcast_to(mask[i:i + 1, :], (C, L)) for i in range(9)]

    # Lane shifts for the 9 taps.  roll(v, shift)[p] == v[p + dy*W + dx]; cross-image /
    # cross-row wraparound is always where the validity mask is 0, so masking fixes it.
    shifts = []
    for dy in (-1, 0, 1):
        for dx in (-1, 0, 1):
            shifts.append((-(dy * W + dx)) % L)

    def conv3x3(v, wmat):
        # v: (C, L) f32 -> (C, L) f32 via a single im2col matmul on the MXU.
        parts = []
        for i, shift in enumerate(shifts):
            t = v if shift == 0 else pltpu.roll(v, shift, axis=1)   # XLU slot (otherwise idle)
            parts.append(t * tap_masks[i])                          # zero "same" padding
        patch = jnp.concatenate(parts, axis=0)                      # (9C, L) im2col patch
        return jnp.dot(wmat, patch, preferred_element_type=jnp.float32)

    h = _leaky(x)                       # self.act(x)
    h = _leaky(conv3x3(h, w1))          # conv1 = Conv2d(bias=False) + LeakyReLU
    h = _leaky(h * s1 + b1)             # bn1 (eval-mode affine), then self.act
    h = _leaky(conv3x3(h, w2))          # conv2 = Conv2d(bias=False) + LeakyReLU
    h = h * s2 + b2                     # bn2 (eval-mode affine)
    res = (h + x).astype(out_ref.dtype)

    for n in range(Nb):                 # static 256-lane slices: unmasked lane-dense stores
        out_ref[n] = res[:, n * M:(n + 1) * M]


def _estimate_vmem_bytes(Nb, C, M):
    L = Nb * M
    io = 2 * (2 * Nb * C * M * 4)        # double-buffered input + output blocks
    weights = 2 * (2 * C * 9 * C * 4)    # two weight matrices, double-buffered
    masks = 2 * 9 * L * 4                # tap-mask block
    bn = 2 * 8 * 128 * 4                 # padded (C,4) tile
    work = 3 * 9 * C * L * 4             # im2col patch + rolled taps working set / spill headroom
    return io + weights + masks + bn + work


def _pick_block_n(N, C, M):
    """Largest batch block that fits the VMEM budget (grid may be 1 on 1-TC chips); prefer an
    even grid for v7x's two TensorCores only when each step stays fat enough to amortize the
    ~0.35us fixed per-step pipeline overhead."""
    fits = [d for d in range(1, N + 1)
            if N % d == 0 and _estimate_vmem_bytes(d, C, M) <= _VMEM_BUDGET]
    if not fits:
        return 1
    nb = max(fits)
    if 2 * nb * C * M * 4 >= _STEP_FAT_BYTES:
        even = [d for d in fits
                if (N // d) % 2 == 0 and 2 * d * C * M * 4 >= _STEP_FAT_BYTES // 2]
        if even:
            nb = max(even)
    return nb


def _make_tap_masks(H, W, Nb):
    M = H * W
    hh, ww = jnp.meshgrid(jnp.arange(H), jnp.arange(W), indexing="ij")
    hh = hh.reshape(1, M)
    ww = ww.reshape(1, M)
    rows = []
    for dy in (-1, 0, 1):
        for dx in (-1, 0, 1):
            ok = (hh + dy >= 0) & (hh + dy < H) & (ww + dx >= 0) & (ww + dx < W)
            rows.append(ok.astype(jnp.float32))
    base = jnp.concatenate(rows, axis=0)           # (9, M)
    return jnp.tile(base, (1, Nb))                 # (9, Nb*M)


def residual_block_pallas(x_nchw, w1, w2, bn1, bn2):
    """x_nchw: (N, C, H, W); w*: (3,3,C,C) in (kh,kw,Cin,Cout); bn* = (gamma, beta, mean, var).

    Note: C a multiple of 8 and H*W a multiple of 128 keep all in-kernel concats/stores
    relayout-free (perf, not correctness)."""
    N, C, H, W = x_nchw.shape
    M = H * W
    x3 = x_nchw.reshape(N, C, M)                   # contiguous reshape; no pad / transpose copies

    def fold_bn(p):
        g, b, m, v = p
        s = g * lax.rsqrt(v + BN_EPS)
        return s.astype(jnp.float32), (b - m * s).astype(jnp.float32)

    s1, b1 = fold_bn(bn1)
    s2, b2 = fold_bn(bn2)
    bn_packed = jnp.stack([s1, b1, s2, b2], axis=1)            # (C, 4)

    # (kh, kw, Cin, Cout) HWIO -> (Cout, 9*Cin), matching the kernel's im2col row order.
    wm1 = jnp.transpose(w1, (3, 0, 1, 2)).reshape(C, 9 * C).astype(jnp.float32)
    wm2 = jnp.transpose(w2, (3, 0, 1, 2)).reshape(C, 9 * C).astype(jnp.float32)

    Nb = _pick_block_n(N, C, M)
    masks = _make_tap_masks(H, W, Nb)                          # (9, Nb*M)

    vmem_limit = int(min(64 << 20, max(32 << 20, 2 * _estimate_vmem_bytes(Nb, C, M))))

    kernel = functools.partial(_residual_block_kernel, Nb=Nb, H=H, W=W)
    out3 = pl.pallas_call(
        kernel,
        out_shape=jax.ShapeDtypeStruct((N, C, M), x_nchw.dtype),
        grid_spec=pltpu.PrefetchScalarGridSpec(
            num_scalar_prefetch=0,
            grid=(N // Nb,),
            in_specs=[
                pl.BlockSpec((Nb, C, M), lambda n: (n, 0, 0)),
                pl.BlockSpec((C, 9 * C), lambda n: (0, 0)),
                pl.BlockSpec((C, 9 * C), lambda n: (0, 0)),
                pl.BlockSpec((C, 4), lambda n: (0, 0)),
                pl.BlockSpec((9, Nb * M), lambda n: (0, 0)),
            ],
            out_specs=pl.BlockSpec((Nb, C, M), lambda n: (n, 0, 0)),
        ),
        compiler_params=pltpu.CompilerParams(
            dimension_semantics=("parallel",),
            vmem_limit_bytes=vmem_limit,
        ),
    )(x3, wm1, wm2, bn_packed, masks)
    return out3.reshape(N, C, H, W)


def residual_block_reference(x_nchw, w1, w2, bn1, bn2):
    """Pure-JAX reference (same eval-mode BN semantics)."""
    x = jnp.transpose(x_nchw, (0, 2, 3, 1))

    def conv(inp, w):
        return lax.conv_general_dilated(inp, w, window_strides=(1, 1), padding="SAME",
                                        dimension_numbers=("NHWC", "HWIO", "NHWC"))

    def bn(inp, p):
        g, b, m, v = p
        return (inp - m) * (g * lax.rsqrt(v + BN_EPS)) + b

    out = _leaky(x)
    out = _leaky(bn(_leaky(conv(out, w1)), bn1))
    out = bn(_leaky(conv(out, w2)), bn2)
    out = out + x
    return jnp.transpose(out, (0, 3, 1, 2))


if __name__ == "__main__":
    N, C, H, W = 2, 8, 16, 16

    key = jax.random.PRNGKey(0)
    kx, kw1, kw2, kb1, kb2 = jax.random.split(key, 5)

    x = jax.random.normal(kx, (N, C, H, W), dtype=jnp.float32)
    # conv weights in (kh, kw, Cin, Cout)  (== torch weight (Cout,Cin,kh,kw).transpose(2,3,1,0))
    w1 = 0.1 * jax.random.normal(kw1, (3, 3, C, C), dtype=jnp.float32)
    w2 = 0.1 * jax.random.normal(kw2, (3, 3, C, C), dtype=jnp.float32)

    def make_bn(k):
        kg, kb, km, kv = jax.random.split(k, 4)
        gamma = 1.0 + 0.1 * jax.random.normal(kg, (C,), dtype=jnp.float32)
        beta = 0.1 * jax.random.normal(kb, (C,), dtype=jnp.float32)
        mean = 0.1 * jax.random.normal(km, (C,), dtype=jnp.float32)
        var = jax.random.uniform(kv, (C,), dtype=jnp.float32, minval=0.5, maxval=1.5)
        return (gamma, beta, mean, var)

    bn1 = make_bn(kb1)
    bn2 = make_bn(kb2)

    out = jax.block_until_ready(residual_block_pallas(x, w1, w2, bn1, bn2))
    ref = jax.block_until_ready(residual_block_reference(x, w1, w2, bn1, bn2))

    assert out.shape == x.shape and out.dtype == x.dtype
    assert jnp.allclose(out, ref, rtol=1e-3, atol=1e-3), float(jnp.max(jnp.abs(out - ref)))
    print("KERNEL_OK")
</pallas_src>

<mosaic_0001>
module attributes {stable_mosaic.version = 11 : i64} {
  func.func @_residual_block_kernel(%arg0: i32, %arg1: memref<2x8x256xf32, #tpu.memory_space<vmem>>, %arg2: memref<8x72xf32, #tpu.memory_space<vmem>>, %arg3: memref<8x72xf32, #tpu.memory_space<vmem>>, %arg4: memref<8x4xf32, #tpu.memory_space<vmem>>, %arg5: memref<9x512xf32, #tpu.memory_space<vmem>>, %arg6: memref<2x8x256xf32, #tpu.memory_space<vmem>>) attributes {dimension_semantics = [#tpu.dimension_semantics<parallel>], iteration_bounds = array<i64: 1>, scalar_prefetch = 0 : i64, scratch_operands = 0 : i64, tpu.core_type = #tpu.core_type<tc>, window_params = [{transform_indices = @transform_0, window_bounds = array<i64: 2, 8, 256>}, {pipeline_mode = #tpu.pipeline_mode<synchronous>, transform_indices = @transform_1, window_bounds = array<i64: 8, 72>}, {pipeline_mode = #tpu.pipeline_mode<synchronous>, transform_indices = @transform_2, window_bounds = array<i64: 8, 72>}, {pipeline_mode = #tpu.pipeline_mode<synchronous>, transform_indices = @transform_3, window_bounds = array<i64: 8, 4>}, {pipeline_mode = #tpu.pipeline_mode<synchronous>, transform_indices = @transform_4, window_bounds = array<i64: 9, 512>}, {transform_indices = @transform_5, window_bounds = array<i64: 2, 8, 256>}]} {
    %c0 = arith.constant 0 : index
    %c0_0 = arith.constant 0 : index
    %0 = vector.load %arg2[%c0, %c0_0] : memref<8x72xf32, #tpu.memory_space<vmem>>, vector<8x72xf32>
    %c0_1 = arith.constant 0 : index
    %c0_2 = arith.constant 0 : index
    %1 = vector.load %arg3[%c0_1, %c0_2] : memref<8x72xf32, #tpu.memory_space<vmem>>, vector<8x72xf32>
    %c0_3 = arith.constant 0 : index
    %c0_4 = arith.constant 0 : index
    %2 = vector.load %arg4[%c0_3, %c0_4] : memref<8x4xf32, #tpu.memory_space<vmem>>, vector<8x4xf32>
    %3 = vector.extract_strided_slice %2 {offsets = [0, 0], sizes = [8, 1], strides = [1, 1]} : vector<8x4xf32> to vector<8x1xf32>
    %4 = vector.extract_strided_slice %2 {offsets = [0, 1], sizes = [8, 1], strides = [1, 1]} : vector<8x4xf32> to vector<8x1xf32>
    %5 = vector.extract_strided_slice %2 {offsets = [0, 2], sizes = [8, 1], strides = [1, 1]} : vector<8x4xf32> to vector<8x1xf32>
    %6 = vector.extract_strided_slice %2 {offsets = [0, 3], sizes = [8, 1], strides = [1, 1]} : vector<8x4xf32> to vector<8x1xf32>
    %c0_5 = arith.constant 0 : index
    %c0_6 = arith.constant 0 : index
    %7 = vector.load %arg5[%c0_5, %c0_6] : memref<9x512xf32, #tpu.memory_space<vmem>>, vector<9x512xf32>
    %c0_7 = arith.constant 0 : index
    %c0_8 = arith.constant 0 : index
    %c0_9 = arith.constant 0 : index
    %8 = vector.load %arg1[%c0_7, %c0_8, %c0_9] : memref<2x8x256xf32, #tpu.memory_space<vmem>>, vector<1x8x256xf32>
    %9 = vector.shape_cast %8 : vector<1x8x256xf32> to vector<8x256xf32>
    %c1 = arith.constant 1 : index
    %c0_10 = arith.constant 0 : index
    %c0_11 = arith.constant 0 : index
    %10 = vector.load %arg1[%c1, %c0_10, %c0_11] : memref<2x8x256xf32, #tpu.memory_space<vmem>>, vector<1x8x256xf32>
    %11 = vector.shape_cast %10 : vector<1x8x256xf32> to vector<8x256xf32>
    %12 = tpu.concatenate %9, %11 in 1 : vector<8x256xf32>, vector<8x256xf32> -> vector<8x512xf32>
    %13 = vector.extract_strided_slice %7 {offsets = [0, 0], sizes = [1, 512], strides = [1, 1]} : vector<9x512xf32> to vector<1x512xf32>
    %14 = vector.shape_cast %13 : vector<1x512xf32> to vector<1x512xf32>
    %15 = vector.broadcast %14 : vector<1x512xf32> to vector<8x512xf32>
    %16 = vector.extract_strided_slice %7 {offsets = [1, 0], sizes = [1, 512], strides = [1, 1]} : vector<9x512xf32> to vector<1x512xf32>
    %17 = vector.shape_cast %16 : vector<1x512xf32> to vector<1x512xf32>
    %18 = vector.broadcast %17 : vector<1x512xf32> to vector<8x512xf32>
    %19 = vector.extract_strided_slice %7 {offsets = [2, 0], sizes = [1, 512], strides = [1, 1]} : vector<9x512xf32> to vector<1x512xf32>
    %20 = vector.shape_cast %19 : vector<1x512xf32> to vector<1x512xf32>
    %21 = vector.broadcast %20 : vector<1x512xf32> to vector<8x512xf32>
    %22 = vector.extract_strided_slice %7 {offsets = [3, 0], sizes = [1, 512], strides = [1, 1]} : vector<9x512xf32> to vector<1x512xf32>
    %23 = vector.shape_cast %22 : vector<1x512xf32> to vector<1x512xf32>
    %24 = vector.broadcast %23 : vector<1x512xf32> to vector<8x512xf32>
    %25 = vector.extract_strided_slice %7 {offsets = [4, 0], sizes = [1, 512], strides = [1, 1]} : vector<9x512xf32> to vector<1x512xf32>
    %26 = vector.shape_cast %25 : vector<1x512xf32> to vector<1x512xf32>
    %27 = vector.broadcast %26 : vector<1x512xf32> to vector<8x512xf32>
    %28 = vector.extract_strided_slice %7 {offsets = [5, 0], sizes = [1, 512], strides = [1, 1]} : vector<9x512xf32> to vector<1x512xf32>
    %29 = vector.shape_cast %28 : vector<1x512xf32> to vector<1x512xf32>
    %30 = vector.broadcast %29 : vector<1x512xf32> to vector<8x512xf32>
    %31 = vector.extract_strided_slice %7 {offsets = [6, 0], sizes = [1, 512], strides = [1, 1]} : vector<9x512xf32> to vector<1x512xf32>
    %32 = vector.shape_cast %31 : vector<1x512xf32> to vector<1x512xf32>
    %33 = vector.broadcast %32 : vector<1x512xf32> to vector<8x512xf32>
    %34 = vector.extract_strided_slice %7 {offsets = [7, 0], sizes = [1, 512], strides = [1, 1]} : vector<9x512xf32> to vector<1x512xf32>
    %35 = vector.shape_cast %34 : vector<1x512xf32> to vector<1x512xf32>
    %36 = vector.broadcast %35 : vector<1x512xf32> to vector<8x512xf32>
    %37 = vector.extract_strided_slice %7 {offsets = [8, 0], sizes = [1, 512], strides = [1, 1]} : vector<9x512xf32> to vector<1x512xf32>
    %38 = vector.shape_cast %37 : vector<1x512xf32> to vector<1x512xf32>
    %39 = vector.broadcast %38 : vector<1x512xf32> to vector<8x512xf32>
    %cst = arith.constant 0.000000e+00 : f32
    %40 = vector.broadcast %cst : f32 to vector<8x512xf32>
    %41 = arith.cmpf ogt, %12, %40 : vector<8x512xf32>
    %cst_12 = arith.constant 1.000000e-01 : f32
    %42 = vector.broadcast %cst_12 : f32 to vector<8x512xf32>
    %43 = arith.mulf %42, %12 : vector<8x512xf32>
    %44 = arith.select %41, %12, %43 : vector<8x512xi1>, vector<8x512xf32>
    %c17_i32 = arith.constant 17 : i32
    %45 = tpu.dynamic_rotate %44 by %c17_i32 dim 1 : vector<8x512xf32>, i32 -> vector<8x512xf32>
    %46 = arith.mulf %45, %15 : vector<8x512xf32>
    %c16_i32 = arith.constant 16 : i32
    %47 = tpu.dynamic_rotate %44 by %c16_i32 dim 1 : vector<8x512xf32>, i32 -> vector<8x512xf32>
    %48 = arith.mulf %47, %18 : vector<8x512xf32>
    %c15_i32 = arith.constant 15 : i32
    %49 = tpu.dynamic_rotate %44 by %c15_i32 dim 1 : vector<8x512xf32>, i32 -> vector<8x512xf32>
    %50 = arith.mulf %49, %21 : vector<8x512xf32>
    %c1_i32 = arith.constant 1 : i32
    %51 = tpu.dynamic_rotate %44 by %c1_i32 dim 1 : vector<8x512xf32>, i32 -> vector<8x512xf32>
    %52 = arith.mulf %51, %24 : vector<8x512xf32>
    %53 = arith.mulf %44, %27 : vector<8x512xf32>
    %c511_i32 = arith.constant 511 : i32
    %54 = tpu.dynamic_rotate %44 by %c511_i32 dim 1 : vector<8x512xf32>, i32 -> vector<8x512xf32>
    %55 = arith.mulf %54, %30 : vector<8x512xf32>
    %c497_i32 = arith.constant 497 : i32
    %56 = tpu.dynamic_rotate %44 by %c497_i32 dim 1 : vector<8x512xf32>, i32 -> vector<8x512xf32>
    %57 = arith.mulf %56, %33 : vector<8x512xf32>
    %c496_i32 = arith.constant 496 : i32
    %58 = tpu.dynamic_rotate %44 by %c496_i32 dim 1 : vector<8x512xf32>, i32 -> vector<8x512xf32>
    %59 = arith.mulf %58, %36 : vector<8x512xf32>
    %c495_i32 = arith.constant 495 : i32
    %60 = tpu.dynamic_rotate %44 by %c495_i32 dim 1 : vector<8x512xf32>, i32 -> vector<8x512xf32>
    %61 = arith.mulf %60, %39 : vector<8x512xf32>
    %62 = tpu.concatenate %46, %48, %50, %52, %53, %55, %57, %59, %61 in 0 : vector<8x512xf32>, vector<8x512xf32>, vector<8x512xf32>, vector<8x512xf32>, vector<8x512xf32>, vector<8x512xf32>, vector<8x512xf32>, vector<8x512xf32>, vector<8x512xf32> -> vector<72x512xf32>
    %cst_13 = arith.constant dense<0.000000e+00> : vector<8x512xf32>
    %63 = tpu.matmul %0, %62, %cst_13 {dimension_numbers = #tpu.dot_dimension_numbers<[1], [0], [0], [1], [0, 0, 1, 1], [], []>} : vector<8x72xf32>, vector<72x512xf32>, vector<8x512xf32> -> vector<8x512xf32>
    %cst_14 = arith.constant 0.000000e+00 : f32
    %64 = vector.broadcast %cst_14 : f32 to vector<8x512xf32>
    %65 = arith.cmpf ogt, %63, %64 : vector<8x512xf32>
    %cst_15 = arith.constant 1.000000e-01 : f32
    %66 = vector.broadcast %cst_15 : f32 to vector<8x512xf32>
    %67 = arith.mulf %66, %63 : vector<8x512xf32>
    %68 = arith.select %65, %63, %67 : vector<8x512xi1>, vector<8x512xf32>
    %69 = vector.broadcast %3 : vector<8x1xf32> to vector<8x512xf32>
    %70 = arith.mulf %68, %69 : vector<8x512xf32>
    %71 = vector.broadcast %4 : vector<8x1xf32> to vector<8x512xf32>
    %72 = arith.addf %70, %71 : vector<8x512xf32>
    %cst_16 = arith.constant 0.000000e+00 : f32
    %73 = vector.broadcast %cst_16 : f32 to vector<8x512xf32>
    %74 = arith.cmpf ogt, %72, %73 : vector<8x512xf32>
    %cst_17 = arith.constant 1.000000e-01 : f32
    %75 = vector.broadcast %cst_17 : f32 to vector<8x512xf32>
    %76 = arith.mulf %75, %72 : vector<8x512xf32>
    %77 = arith.select %74, %72, %76 : vector<8x512xi1>, vector<8x512xf32>
    %c17_i32_18 = arith.constant 17 : i32
    %78 = tpu.dynamic_rotate %77 by %c17_i32_18 dim 1 : vector<8x512xf32>, i32 -> vector<8x512xf32>
    %79 = arith.mulf %78, %15 : vector<8x512xf32>
    %c16_i32_19 = arith.constant 16 : i32
    %80 = tpu.dynamic_rotate %77 by %c16_i32_19 dim 1 : vector<8x512xf32>, i32 -> vector<8x512xf32>
    %81 = arith.mulf %80, %18 : vector<8x512xf32>
    %c15_i32_20 = arith.constant 15 : i32
    %82 = tpu.dynamic_rotate %77 by %c15_i32_20 dim 1 : vector<8x512xf32>, i32 -> vector<8x512xf32>
    %83 = arith.mulf %82, %21 : vector<8x512xf32>
    %c1_i32_21 = arith.constant 1 : i32
    %84 = tpu.dynamic_rotate %77 by %c1_i32_21 dim 1 : vector<8x512xf32>, i32 -> vector<8x512xf32>
    %85 = arith.mulf %84, %24 : vector<8x512xf32>
    %86 = arith.mulf %77, %27 : vector<8x512xf32>
    %c511_i32_22 = arith.constant 511 : i32
    %87 = tpu.dynamic_rotate %77 by %c511_i32_22 dim 1 : vector<8x512xf32>, i32 -> vector<8x512xf32>
    %88 = arith.mulf %87, %30 : vector<8x512xf32>
    %c497_i32_23 = arith.constant 497 : i32
    %89 = tpu.dynamic_rotate %77 by %c497_i32_23 dim 1 : vector<8x512xf32>, i32 -> vector<8x512xf32>
    %90 = arith.mulf %89, %33 : vector<8x512xf32>
    %c496_i32_24 = arith.constant 496 : i32
    %91 = tpu.dynamic_rotate %77 by %c496_i32_24 dim 1 : vector<8x512xf32>, i32 -> vector<8x512xf32>
    %92 = arith.mulf %91, %36 : vector<8x512xf32>
    %c495_i32_25 = arith.constant 495 : i32
    %93 = tpu.dynamic_rotate %77 by %c495_i32_25 dim 1 : vector<8x512xf32>, i32 -> vector<8x512xf32>
    %94 = arith.mulf %93, %39 : vector<8x512xf32>
    %95 = tpu.concatenate %79, %81, %83, %85, %86, %88, %90, %92, %94 in 0 : vector<8x512xf32>, vector<8x512xf32>, vector<8x512xf32>, vector<8x512xf32>, vector<8x512xf32>, vector<8x512xf32>, vector<8x512xf32>, vector<8x512xf32>, vector<8x512xf32> -> vector<72x512xf32>
    %cst_26 = arith.constant dense<0.000000e+00> : vector<8x512xf32>
    %96 = tpu.matmul %1, %95, %cst_26 {dimension_numbers = #tpu.dot_dimension_numbers<[1], [0], [0], [1], [0, 0, 1, 1], [], []>} : vector<8x72xf32>, vector<72x512xf32>, vector<8x512xf32> -> vector<8x512xf32>
    %cst_27 = arith.constant 0.000000e+00 : f32
    %97 = vector.broadcast %cst_27 : f32 to vector<8x512xf32>
    %98 = arith.cmpf ogt, %96, %97 : vector<8x512xf32>
    %cst_28 = arith.constant 1.000000e-01 : f32
    %99 = vector.broadcast %cst_28 : f32 to vector<8x512xf32>
    %100 = arith.mulf %99, %96 : vector<8x512xf32>
    %101 = arith.select %98, %96, %100 : vector<8x512xi1>, vector<8x512xf32>
    %102 = vector.broadcast %5 : vector<8x1xf32> to vector<8x512xf32>
    %103 = arith.mulf %101, %102 : vector<8x512xf32>
    %104 = vector.broadcast %6 : vector<8x1xf32> to vector<8x512xf32>
    %105 = arith.addf %103, %104 : vector<8x512xf32>
    %106 = arith.addf %105, %12 : vector<8x512xf32>
    %107 = vector.extract_strided_slice %106 {offsets = [0, 0], sizes = [8, 256], strides = [1, 1]} : vector<8x512xf32> to vector<8x256xf32>
    %c0_29 = arith.constant 0 : index
    %c0_30 = arith.constant 0 : index
    %c0_31 = arith.constant 0 : index
    %108 = vector.load %arg6[%c0_29, %c0_30, %c0_31] : memref<2x8x256xf32, #tpu.memory_space<vmem>>, vector<1x8x256xf32>
    %109 = vector.shape_cast %108 : vector<1x8x256xf32> to vector<8x256xf32>
    %110 = vector.shape_cast %107 : vector<8x256xf32> to vector<1x8x256xf32>
    tpu.vector_store %arg6[%c0_29, %c0_30, %c0_31], %110 {strides = array<i32>} : memref<2x8x256xf32, #tpu.memory_space<vmem>>, vector<1x8x256xf32>,
    %111 = vector.extract_strided_slice %106 {offsets = [0, 256], sizes = [8, 256], strides = [1, 1]} : vector<8x512xf32> to vector<8x256xf32>
    %c1_32 = arith.constant 1 : index
    %c0_33 = arith.constant 0 : index
    %c0_34 = arith.constant 0 : index
    %112 = vector.load %arg6[%c1_32, %c0_33, %c0_34] : memref<2x8x256xf32, #tpu.memory_space<vmem>>, vector<1x8x256xf32>
    %113 = vector.shape_cast %112 : vector<1x8x256xf32> to vector<8x256xf32>
    %114 = vector.shape_cast %111 : vector<8x256xf32> to vector<1x8x256xf32>
    tpu.vector_store %arg6[%c1_32, %c0_33, %c0_34], %114 {strides = array<i32>} : memref<2x8x256xf32, #tpu.memory_space<vmem>>, vector<1x8x256xf32>,
    return
  }
  func.func @transform_0(%arg0: i32) -> (i32, i32, i32) {
    %c0_i32 = arith.constant 0 : i32
    %c0_i32_0 = arith.constant 0 : i32
    %c0_i32_1 = arith.constant 0 : i32
    return %arg0, %c0_i32, %c0_i32_0 : i32, i32, i32
  }
  func.func @transform_1(%arg0: i32) -> (i32, i32) {
    %c0_i32 = arith.constant 0 : i32
    %c0_i32_0 = arith.constant 0 : i32
    %c0_i32_1 = arith.constant 0 : i32
    return %c0_i32, %c0_i32_0 : i32, i32
  }
  func.func @transform_2(%arg0: i32) -> (i32, i32) {
    %c0_i32 = arith.constant 0 : i32
    %c0_i32_0 = arith.constant 0 : i32
    %c0_i32_1 = arith.constant 0 : i32
    return %c0_i32, %c0_i32_0 : i32, i32
  }
  func.func @transform_3(%arg0: i32) -> (i32, i32) {
    %c0_i32 = arith.constant 0 : i32
    %c0_i32_0 = arith.constant 0 : i32
    %c0_i32_1 = arith.constant 0 : i32
    return %c0_i32, %c0_i32_0 : i32, i32
  }
  func.func @transform_4(%arg0: i32) -> (i32, i32) {
    %c0_i32 = arith.constant 0 : i32
    %c0_i32_0 = arith.constant 0 : i32
    %c0_i32_1 = arith.constant 0 : i32
    return %c0_i32, %c0_i32_0 : i32, i32
  }
  func.func @transform_5(%arg0: i32) -> (i32, i32, i32) {
    %c0_i32 = arith.constant 0 : i32
    %c0_i32_0 = arith.constant 0 : i32
    %c0_i32_1 = arith.constant 0 : i32
    return %arg0, %c0_i32, %c0_i32_0 : i32, i32, i32
  }
}

</mosaic_0001>

<llo_original>
// kernel: tpu_custom_call.1
$region0: #{tpu_custom_call.1}
  #allocation0 [shape = 'u32[]', space=smem, size = 0x4, offset = 0x4, fixed_abs, tag = 'smem constant byte address 0x4 - core index']
  #allocation1 [shape = 'u32[144,128]{1,0:T(1,128)}', space=vmem, size = 0x12000, scoped, tag = 'internal scratch']
  %s0 = inlined_call_operand.hbm [shape: f32[2,8,256], index: 0, kind: input, shape index: {}]
  %s1 = inlined_call_operand.vmem [shape: f32[8,72], index: 1, kind: input, shape index: {}]
  %s2 = inlined_call_operand.vmem [shape: f32[8,72], index: 2, kind: input, shape index: {}]
  %s3 = inlined_call_operand.vmem [shape: f32[8,4], index: 3, kind: input, shape index: {}]
  %s4 = inlined_call_operand.hbm [shape: f32[9,512], index: 4, kind: input, shape index: {}]
  %s5 = inlined_call_operand.hbm [shape: f32[2,8,256], index: 5, kind: output, shape index: {}]
  %s6 = sld [smem:[#allocation0]]
  $region38: #{tpu_custom_call.1} parent=0
    _
  %s8 = ssub.s32 1, %s6
  %s9 = scalar_select 0, %s8, %s6
  $region1: #{tpu_custom_call.1} parent=0
    #allocation2 [shape = 'u8[16384]{0}', space=vmem, size = 0x4000, scoped, tag = 'input window, operand 0, single buffered']
    #allocation3 [shape = 's32[1]{0}', space=sflag, size = 0x4, scoped, tag = 'scoped memory for tpu_custom_call.1']
    #allocation4 [shape = 's32[1]{0}', space=sflag, size = 0x4, scoped, tag = 'scoped memory for tpu_custom_call.1']
    #allocation5 [shape = 'u8[32768]{0}', space=vmem, size = 0x8000, scoped, tag = 'input window, operand 4, single buffered']
    #allocation6 [shape = 's32[1]{0}', space=sflag, size = 0x4, scoped, tag = 'scoped memory for tpu_custom_call.1']
    #allocation7 [shape = 'u8[16384]{0}', space=vmem, size = 0x4000, scoped, tag = 'output window, operand 0, single buffered']
    %10 = vsyncpa [#allocation3], 0
    %11 = vsyncpa [#allocation6], 0
    %12 = vsyncpa [#allocation4], 0
    // Predicated region
    $region2: #{tpu_custom_call.1} parent=1 // pred_check
      _
    $region3: #{tpu_custom_call.1} parent=1 // pred_check_branch
      %14 = sbr.rel (0) target = $region5
    $region4: #{tpu_custom_call.1} parent=1 // pred_region
      %s16 = ssub.s32 512, 512
      %17 = vsyncadd [#allocation3], %s16
      %s18 = sshll.u32 [#allocation2], 4
      %s19 = int_to_ptr.vmem [resolvable:$true] %s18
      %24 = dma.hbm_to_vmem [thread:$0]  %s0, 512, %s19, [#allocation3], 256, 256, 16
    $region5: #{tpu_custom_call.1} parent=1 // pred_fallthru
      _
    // Predicated region
    $region6: #{tpu_custom_call.1} parent=1 // pred_check
      _
    $region7: #{tpu_custom_call.1} parent=1 // pred_check_branch
      %26 = sbr.rel (0) target = $region9
    $region8: #{tpu_custom_call.1} parent=1 // pred_region
      _
    $region9: #{tpu_custom_call.1} parent=1 // pred_fallthru
      _
    // Predicated region
    $region10: #{tpu_custom_call.1} parent=1 // pred_check
      _
    $region11: #{tpu_custom_call.1} parent=1 // pred_check_branch
      %28 = sbr.rel (0) target = $region13
    $region12: #{tpu_custom_call.1} parent=1 // pred_region
      _
    $region13: #{tpu_custom_call.1} parent=1 // pred_fallthru
      _
    // Predicated region
    $region14: #{tpu_custom_call.1} parent=1 // pred_check
      _
    $region15: #{tpu_custom_call.1} parent=1 // pred_check_branch
      %30 = sbr.rel (0) target = $region17
    $region16: #{tpu_custom_call.1} parent=1 // pred_region
      _
    $region17: #{tpu_custom_call.1} parent=1 // pred_fallthru
      _
    // Predicated region
    $region18: #{tpu_custom_call.1} parent=1 // pred_check
      _
    $region19: #{tpu_custom_call.1} parent=1 // pred_check_branch
      %32 = sbr.rel (0) target = $region21
    $region20: #{tpu_custom_call.1} parent=1 // pred_region
      %s34 = ssub.s32 1024, 1024
      %35 = vsyncadd [#allocation6], %s34
      %s36 = sshll.u32 [#allocation5], 4
      %s37 = int_to_ptr.vmem [resolvable:$true] %s36
      %42 = dma.hbm_to_vmem [thread:$0]  %s4, 1024, %s37, [#allocation6], 512, 512, 32
    $region21: #{tpu_custom_call.1} parent=1 // pred_fallthru
      _
    // Predicated region
    $region22: #{tpu_custom_call.1} parent=1 // pred_check
      _
    $region23: #{tpu_custom_call.1} parent=1 // pred_check_branch
      %44 = sbr.rel (0) target = $region25
    $region24: #{tpu_custom_call.1} parent=1 // pred_region
      %45 = dma.done [#allocation3], 512
    $region25: #{tpu_custom_call.1} parent=1 // pred_fallthru
      _
    // Predicated region
    $region26: #{tpu_custom_call.1} parent=1 // pred_check
      _
    $region27: #{tpu_custom_call.1} parent=1 // pred_check_branch
      %47 = sbr.rel (0) target = $region29
    $region28: #{tpu_custom_call.1} parent=1 // pred_region
      %48 = dma.done [#allocation6], 1024
    $region29: #{tpu_custom_call.1} parent=1 // pred_fallthru
      _
    %v49 = vld [vmem:[%s1] sm:$0xff]
    %v50 = vld [vmem:[%s2] sm:$0xff]
    %v51 = vld [vmem:[%s3] sm:$0xff]
    %v52 = vld [vmem:[#allocation5] sm:$0xff]
    %v53 = vld [vmem:[#allocation5 + $0x8] sm:$0xff]
    %v54 = vld [vmem:[#allocation5 + $0x10] sm:$0xff]
    %v55 = vld [vmem:[#allocation5 + $0x18] sm:$0xff]
    %v56 = vld [vmem:[#allocation5 + $0x20] sm:$0x1]
    %v57 = vld [vmem:[#allocation5 + $0x28] sm:$0x1]
    %v58 = vld [vmem:[#allocation5 + $0x30] sm:$0x1]
    %v59 = vld [vmem:[#allocation5 + $0x38] sm:$0x1]
    %v60 = vld [vmem:[#allocation2] sm:$0xff]
    %v61 = vld [vmem:[#allocation2 + $0x8] sm:$0xff]
    %s62 = scalar_lea.vmem [#allocation2], 16
    %v63 = vld [vmem:[%s62] sm:$0xff]
    %v64 = vld [vmem:[%s62 + $0x8] sm:$0xff]
    %v65 = vlaneseq
    %v66 = vshrl.u32 %v65, 7
    %v67 = vsub.s32 0, %v66
    %v68 = vrot.slane %v52, %v67
    %v69 = vlaneseq
    %v70 = vshrl.u32 %v69, 7
    %v71 = vsub.s32 0, %v70
    %v72 = vrot.slane %v53, %v71
    %v73 = vlaneseq
    %v74 = vshrl.u32 %v73, 7
    %v75 = vsub.s32 0, %v74
    %v76 = vrot.slane %v54, %v75
    %v77 = vlaneseq
    %v78 = vshrl.u32 %v77, 7
    %v79 = vsub.s32 0, %v78
    %v80 = vrot.slane %v55, %v79
    %v81 = vlaneseq
    %v82 = vshrl.u32 %v81, 7
    %v83 = vsub.s32 1, %v82
    %v84 = vrot.slane %v52, %v83
    %v85 = vlaneseq
    %v86 = vshrl.u32 %v85, 7
    %v87 = vsub.s32 1, %v86
    %v88 = vrot.slane %v53, %v87
    %v89 = vlaneseq
    %v90 = vshrl.u32 %v89, 7
    %v91 = vsub.s32 1, %v90
    %v92 = vrot.slane %v54, %v91
    %v93 = vlaneseq
    %v94 = vshrl.u32 %v93, 7
    %v95 = vsub.s32 1, %v94
    %v96 = vrot.slane %v55, %v95
    %v97 = vlaneseq
    %v98 = vshrl.u32 %v97, 7
    %v99 = vsub.s32 2, %v98
    %v100 = vrot.slane %v52, %v99
    %v101 = vlaneseq
    %v102 = vshrl.u32 %v101, 7
    %v103 = vsub.s32 2, %v102
    %v104 = vrot.slane %v53, %v103
    %v105 = vlaneseq
    %v106 = vshrl.u32 %v105, 7
    %v107 = vsub.s32 2, %v106
    %v108 = vrot.slane %v54, %v107
    %v109 = vlaneseq
    %v110 = vshrl.u32 %v109, 7
    %v111 = vsub.s32 2, %v110
    %v112 = vrot.slane %v55, %v111
    %v113 = vlaneseq
    %v114 = vshrl.u32 %v113, 7
    %v115 = vsub.s32 3, %v114
    %v116 = vrot.slane %v52, %v115
    %v117 = vlaneseq
    %v118 = vshrl.u32 %v117, 7
    %v119 = vsub.s32 3, %v118
    %v120 = vrot.slane %v53, %v119
    %v121 = vlaneseq
    %v122 = vshrl.u32 %v121, 7
    %v123 = vsub.s32 3, %v122
    %v124 = vrot.slane %v54, %v123
    %v125 = vlaneseq
    %v126 = vshrl.u32 %v125, 7
    %v127 = vsub.s32 3, %v126
    %v128 = vrot.slane %v55, %v127
    %v129 = vlaneseq
    %v130 = vshrl.u32 %v129, 7
    %v131 = vsub.s32 4, %v130
    %v132 = vrot.slane %v52, %v131
    %v133 = vlaneseq
    %v134 = vshrl.u32 %v133, 7
    %v135 = vsub.s32 4, %v134
    %v136 = vrot.slane %v53, %v135
    %v137 = vlaneseq
    %v138 = vshrl.u32 %v137, 7
    %v139 = vsub.s32 4, %v138
    %v140 = vrot.slane %v54, %v139
    %v141 = vlaneseq
    %v142 = vshrl.u32 %v141, 7
    %v143 = vsub.s32 4, %v142
    %v144 = vrot.slane %v55, %v143
    %v145 = vlaneseq
    %v146 = vshrl.u32 %v145, 7
    %v147 = vsub.s32 5, %v146
    %v148 = vrot.slane %v52, %v147
    %v149 = vlaneseq
    %v150 = vshrl.u32 %v149, 7
    %v151 = vsub.s32 5, %v150
    %v152 = vrot.slane %v53, %v151
    %v153 = vlaneseq
    %v154 = vshrl.u32 %v153, 7
    %v155 = vsub.s32 5, %v154
    %v156 = vrot.slane %v54, %v155
    %v157 = vlaneseq
    %v158 = vshrl.u32 %v157, 7
    %v159 = vsub.s32 5, %v158
    %v160 = vrot.slane %v55, %v159
    %v161 = vlaneseq
    %v162 = vshrl.u32 %v161, 7
    %v163 = vsub.s32 6, %v162
    %v164 = vrot.slane %v52, %v163
    %v165 = vlaneseq
    %v166 = vshrl.u32 %v165, 7
    %v167 = vsub.s32 6, %v166
    %v168 = vrot.slane %v53, %v167
    %v169 = vlaneseq
    %v170 = vshrl.u32 %v169, 7
    %v171 = vsub.s32 6, %v170
    %v172 = vrot.slane %v54, %v171
    %v173 = vlaneseq
    %v174 = vshrl.u32 %v173, 7
    %v175 = vsub.s32 6, %v174
    %v176 = vrot.slane %v55, %v175
    %v177 = vlaneseq
    %v178 = vshrl.u32 %v177, 7
    %v179 = vsub.s32 7, %v178
    %v180 = vrot.slane %v52, %v179
    %v181 = vlaneseq
    %v182 = vshrl.u32 %v181, 7
    %v183 = vsub.s32 7, %v182
    %v184 = vrot.slane %v53, %v183
    %v185 = vlaneseq
    %v186 = vshrl.u32 %v185, 7
    %v187 = vsub.s32 7, %v186
    %v188 = vrot.slane %v54, %v187
    %v189 = vlaneseq
    %v190 = vshrl.u32 %v189, 7
    %v191 = vsub.s32 7, %v190
    %v192 = vrot.slane %v55, %v191
    %v193 = vlaneseq
    %v194 = vshrl.u32 %v193, 7
    %v195 = vsub.s32 0, %v194
    %v196 = vrot.slane %v56, %v195
    %v197 = vlaneseq
    %v198 = vshrl.u32 %v197, 7
    %v199 = vsub.s32 0, %v198
    %v200 = vrot.slane %v57, %v199
    %v201 = vlaneseq
    %v202 = vshrl.u32 %v201, 7
    %v203 = vsub.s32 0, %v202
    %v204 = vrot.slane %v58, %v203
    %v205 = vlaneseq
    %v206 = vshrl.u32 %v205, 7
    %v207 = vsub.s32 0, %v206
    %v208 = vrot.slane %v59, %v207
    %vm209 = vcmp.gt.f32.partialorder %v60, 0.0
    %vm210 = vcmp.gt.f32.partialorder %v61, 0.0
    %vm211 = vcmp.gt.f32.partialorder %v63, 0.0
    %vm212 = vcmp.gt.f32.partialorder %v64, 0.0
    %v213 = vmul.f32 %v60, 0.1
    %v214 = vmul.f32 %v61, 0.1
    %v215 = vmul.f32 %v63, 0.1
    %v216 = vmul.f32 %v64, 0.1
    %v217 = vsel %vm209, %v60, %v213
    %v218 = vsel %vm210, %v61, %v214
    %v219 = vsel %vm211, %v63, %v215
    %v220 = vsel %vm212, %v64, %v216
    %221 = vrot.lane.b32.xlu0 %v217, 17
    %v222 = vpop.permute.xlu0 %221
    %223 = vrot.lane.b32.xlu0 %v218, 17
    %v224 = vpop.permute.xlu0 %223
    %225 = vrot.lane.b32.xlu0 %v219, 17
    %v226 = vpop.permute.xlu0 %225
    %227 = vrot.lane.b32.xlu0 %v220, 17
    %v228 = vpop.permute.xlu0 %227
    %v229 = vlaneseq
    %v230 = vand.u32 %v229, 127
    %vm231 = vcmp.lt.s32.totalorder %v230, 17
    %v232 = vsel %vm231, %v226, %v228
    %v233 = vsel %vm231, %v224, %v226
    %v234 = vsel %vm231, %v222, %v224
    %v235 = vsel %vm231, %v228, %v222
    %v236 = vmul.f32 %v235, %v68
    %v237 = vmul.f32 %v234, %v72
    %v238 = vmul.f32 %v233, %v76
    %v239 = vmul.f32 %v232, %v80
    %240 = vrot.lane.b32.xlu0 %v217, 16
    %v241 = vpop.permute.xlu0 %240
    %242 = vrot.lane.b32.xlu0 %v218, 16
    %v243 = vpop.permute.xlu0 %242
    %244 = vrot.lane.b32.xlu0 %v219, 16
    %v245 = vpop.permute.xlu0 %244
    %246 = vrot.lane.b32.xlu0 %v220, 16
    %v247 = vpop.permute.xlu0 %246
    %vm248 = vcmp.lt.s32.totalorder %v230, 16
    %v249 = vsel %vm248, %v245, %v247
    %v250 = vsel %vm248, %v243, %v245
    %v251 = vsel %vm248, %v241, %v243
    %v252 = vsel %vm248, %v247, %v241
    %v253 = vmul.f32 %v252, %v84
    %v254 = vmul.f32 %v251, %v88
    %v255 = vmul.f32 %v250, %v92
    %v256 = vmul.f32 %v249, %v96
    %257 = vrot.lane.b32.xlu0 %v217, 15
    %v258 = vpop.permute.xlu0 %257
    %259 = vrot.lane.b32.xlu0 %v218, 15
    %v260 = vpop.permute.xlu0 %259
    %261 = vrot.lane.b32.xlu0 %v219, 15
    %v262 = vpop.permute.xlu0 %261
    %263 = vrot.lane.b32.xlu0 %v220, 15
    %v264 = vpop.permute.xlu0 %263
    %vm265 = vcmp.lt.s32.totalorder %v230, 15
    %v266 = vsel %vm265, %v262, %v264
    %v267 = vsel %vm265, %v260, %v262
    %v268 = vsel %vm265, %v258, %v260
    %v269 = vsel %vm265, %v264, %v258
    %v270 = vmul.f32 %v269, %v100
    %v271 = vmul.f32 %v268, %v104
    %v272 = vmul.f32 %v267, %v108
    %v273 = vmul.f32 %v266, %v112
    %274 = vrot.lane.b32.xlu0 %v217, 1
    %v275 = vpop.permute.xlu0 %274
    %276 = vrot.lane.b32.xlu0 %v218, 1
    %v277 = vpop.permute.xlu0 %276
    %278 = vrot.lane.b32.xlu0 %v219, 1
    %v279 = vpop.permute.xlu0 %278
    %280 = vrot.lane.b32.xlu0 %v220, 1
    %v281 = vpop.permute.xlu0 %280
    %vm282 = vcmp.lt.s32.totalorder %v230, 1
    %v283 = vsel %vm282, %v279, %v281
    %v284 = vsel %vm282, %v277, %v279
    %v285 = vsel %vm282, %v275, %v277
    %v286 = vsel %vm282, %v281, %v275
    %v287 = vmul.f32 %v286, %v116
    %v288 = vmul.f32 %v285, %v120
    %v289 = vmul.f32 %v284, %v124
    %v290 = vmul.f32 %v283, %v128
    %v291 = vmul.f32 %v217, %v132
    %v292 = vmul.f32 %v218, %v136
    %v293 = vmul.f32 %v219, %v140
    %v294 = vmul.f32 %v220, %v144
    %295 = vrot.lane.b32.xlu0 %v217, 127
    %v296 = vpop.permute.xlu0 %295
    %297 = vrot.lane.b32.xlu0 %v218, 127
    %v298 = vpop.permute.xlu0 %297
    %299 = vrot.lane.b32.xlu0 %v219, 127
    %v300 = vpop.permute.xlu0 %299
    %301 = vrot.lane.b32.xlu0 %v220, 127
    %v302 = vpop.permute.xlu0 %301
    %vm303 = vcmp.lt.s32.totalorder %v230, 127
    %v304 = vsel %vm303, %v300, %v302
    %v305 = vsel %vm303, %v298, %v300
    %v306 = vsel %vm303, %v296, %v298
    %v307 = vsel %vm303, %v302, %v296
    %v308 = vmul.f32 %v306, %v148
    %v309 = vmul.f32 %v305, %v152
    %v310 = vmul.f32 %v304, %v156
    %v311 = vmul.f32 %v307, %v160
    %312 = vrot.lane.b32.xlu0 %v217, 113
    %v313 = vpop.permute.xlu0 %312
    %314 = vrot.lane.b32.xlu0 %v218, 113
    %v315 = vpop.permute.xlu0 %314
    %316 = vrot.lane.b32.xlu0 %v219, 113
    %v317 = vpop.permute.xlu0 %316
    %318 = vrot.lane.b32.xlu0 %v220, 113
    %v319 = vpop.permute.xlu0 %318
    %vm320 = vcmp.lt.s32.totalorder %v230, 113
    %v321 = vsel %vm320, %v317, %v319
    %v322 = vsel %vm320, %v315, %v317
    %v323 = vsel %vm320, %v313, %v315
    %v324 = vsel %vm320, %v319, %v313
    %v325 = vmul.f32 %v323, %v164
    %v326 = vmul.f32 %v322, %v168
    %v327 = vmul.f32 %v321, %v172
    %v328 = vmul.f32 %v324, %v176
    %329 = vrot.lane.b32.xlu0 %v217, 112
    %v330 = vpop.permute.xlu0 %329
    %331 = vrot.lane.b32.xlu0 %v218, 112
    %v332 = vpop.permute.xlu0 %331
    %333 = vrot.lane.b32.xlu0 %v219, 112
    %v334 = vpop.permute.xlu0 %333
    %335 = vrot.lane.b32.xlu0 %v220, 112
    %v336 = vpop.permute.xlu0 %335
    %vm337 = vcmp.lt.s32.totalorder %v230, 112
    %v338 = vsel %vm337, %v334, %v336
    %v339 = vsel %vm337, %v332, %v334
    %v340 = vsel %vm337, %v330, %v332
    %v341 = vsel %vm337, %v336, %v330
    %v342 = vmul.f32 %v340, %v180
    %v343 = vmul.f32 %v339, %v184
    %v344 = vmul.f32 %v338, %v188
    %v345 = vmul.f32 %v341, %v192
    %346 = vrot.lane.b32.xlu0 %v217, 111
    %v347 = vpop.permute.xlu0 %346
    %348 = vrot.lane.b32.xlu0 %v218, 111
    %v349 = vpop.permute.xlu0 %348
    %350 = vrot.lane.b32.xlu0 %v219, 111
    %v351 = vpop.permute.xlu0 %350
    %352 = vrot.lane.b32.xlu0 %v220, 111
    %v353 = vpop.permute.xlu0 %352
    %vm354 = vcmp.lt.s32.totalorder %v230, 111
    %v355 = vsel %vm354, %v351, %v353
    %v356 = vsel %vm354, %v349, %v351
    %v357 = vsel %vm354, %v347, %v349
    %v358 = vsel %vm354, %v353, %v347
    %v359 = vmul.f32 %v357, %v196
    %v360 = vmul.f32 %v356, %v200
    %v361 = vmul.f32 %v355, %v204
    %v362 = vmul.f32 %v358, %v208
    %vm363 = vcmask 588800
    %v365 = vsel %vm363, %v49, 0
    %367 = vmatprep.subr.mxu0 %v237
    %368 = vmatpush1.msra.mxu0 %v236
    %369 = vmatprep.subr.mxu0 %v254
    %370 = vmatpush1.msra.mxu0 %v253
    %371 = vmatprep.subr.mxu0 %v271
    %372 = vmatpush1.msra.mxu0 %v270
    %373 = vmatprep.subr.mxu0 %v288
    %374 = vmatpush1.msra.mxu0 %v287
    %375 = vmatprep.subr.mxu0 %v292
    %376 = vmatpush1.msra.mxu0 %v291
    %377 = vmatprep.subr.mxu0 %v309
    %378 = vmatpush1.msra.mxu0 %v308
    %379 = vmatprep.subr.mxu0 %v326
    %380 = vmatpush1.msra.mxu0 %v325
    %381 = vmatprep.subr.mxu0 %v343
    %382 = vmatpush1.msra.mxu0 %v342
    %383 = vmatprep.subr.mxu0 %v360
    %384 = vmatpush1.msra.mxu0 %v359
    %385 = vmatprep.subr.mxu0 0.0
    %386 = vmatpush1.msra.mxu0 0.0
    %387 = vmatprep.subr.mxu0 0.0
    %388 = vmatpush1.msra.mxu0 0.0
    %389 = vmatprep.subr.mxu0 0.0
    %390 = vmatpush1.msra.mxu0 0.0
    %391 = vmatprep.subr.mxu0 0.0
    %392 = vmatpush1.msra.mxu0 0.0
    %393 = vmatprep.subr.mxu0 0.0
    %394 = vmatpush1.msra.mxu0 0.0
    %395 = vmatprep.subr.mxu0 0.0
    %396 = vmatpush1.msra.mxu0 0.0
    %397 = vmatprep.subr.mxu0 0.0
    %398 = vmatpush1.msra.mxu0 0.0
    %399 = vmatprep.subr.mxu0 0.0
    %400 = vmatpush1.msra.mxu0 0.0
    %401 = vmatprep.subr.mxu0 0.0
    %402 = vmatpush1.msra.mxu0 0.0
    %403 = vmatprep.subr.mxu0 0.0
    %404 = vmatpush1.msra.mxu0 0.0
    %405 = vmatprep.subr.mxu0 0.0
    %406 = vmatpush1.msra.mxu0 0.0
    %407 = vmatprep.subr.mxu0 0.0
    %408 = vmatpush1.msra.mxu0 0.0
    %409 = vmatprep.subr.mxu0 0.0
    %410 = vmatpush1.msra.mxu0 0.0
    %411 = vmatprep.subr.mxu0 0.0
    %412 = vmatpush1.msra.mxu0 0.0
    %413 = vmatprep.subr.mxu0 0.0
    %414 = vmatpush1.msra.mxu0 0.0
    %415 = vmatprep.subr.mxu0 0.0
    %416 = vmatpush1.msra.mxu0 0.0
    %417 = vmatprep.subr.mxu0 0.0
    %418 = vmatpush1.msra.mxu0 0.0
    %419 = vmatprep.subr.mxu0 0.0
    %420 = vmatpush1.msra.mxu0 0.0
    %421 = vmatprep.subr.mxu0 0.0
    %422 = vmatpush1.msra.mxu0 0.0
    %423 = vmatprep.subr.mxu0 0.0
    %424 = vmatpush1.msra.mxu0 0.0
    %425 = vmatprep.subr.mxu0 0.0
    %426 = vmatpush1.msra.mxu0 0.0
    %427 = vmatprep.subr.mxu0 0.0
    %428 = vmatpush1.msra.mxu0 0.0
    %429 = vmatprep.subr.mxu0 0.0
    %430 = vmatpush1.msra.mxu0 0.0
    %431 = vmatprep.mubr.f32.mxu0 0.0
    %432 = vmatmul.mubr.f32.gmra.mrb[0].mxu0 %v365
    %v433 = vpop.f32.mrb[0].mxu0
    %v434 = vadd.f32 0.0, %v433
    %v435 = vpop.f32.mrb[0].mxu0
    %v436 = vadd.f32 0.0, %v435
    %437 = vdwg.mxu0
    %438 = vmatprep.subr.mxu0 %v239
    %439 = vmatpush1.msra.mxu0 %v238
    %440 = vmatprep.subr.mxu0 %v256
    %441 = vmatpush1.msra.mxu0 %v255
    %442 = vmatprep.subr.mxu0 %v273
    %443 = vmatpush1.msra.mxu0 %v272
    %444 = vmatprep.subr.mxu0 %v290
    %445 = vmatpush1.msra.mxu0 %v289
    %446 = vmatprep.subr.mxu0 %v294
    %447 = vmatpush1.msra.mxu0 %v293
    %448 = vmatprep.subr.mxu0 %v311
    %449 = vmatpush1.msra.mxu0 %v310
    %450 = vmatprep.subr.mxu0 %v328
    %451 = vmatpush1.msra.mxu0 %v327
    %452 = vmatprep.subr.mxu0 %v345
    %453 = vmatpush1.msra.mxu0 %v344
    %454 = vmatprep.subr.mxu0 %v362
    %455 = vmatpush1.msra.mxu0 %v361
    %456 = vmatprep.subr.mxu0 0.0
    %457 = vmatpush1.msra.mxu0 0.0
    %458 = vmatprep.subr.mxu0 0.0
    %459 = vmatpush1.msra.mxu0 0.0
    %460 = vmatprep.subr.mxu0 0.0
    %461 = vmatpush1.msra.mxu0 0.0
    %462 = vmatprep.subr.mxu0 0.0
    %463 = vmatpush1.msra.mxu0 0.0
    %464 = vmatprep.subr.mxu0 0.0
    %465 = vmatpush1.msra.mxu0 0.0
    %466 = vmatprep.subr.mxu0 0.0
    %467 = vmatpush1.msra.mxu0 0.0
    %468 = vmatprep.subr.mxu0 0.0
    %469 = vmatpush1.msra.mxu0 0.0
    %470 = vmatprep.subr.mxu0 0.0
    %471 = vmatpush1.msra.mxu0 0.0
    %472 = vmatprep.subr.mxu0 0.0
    %473 = vmatpush1.msra.mxu0 0.0
    %474 = vmatprep.subr.mxu0 0.0
    %475 = vmatpush1.msra.mxu0 0.0
    %476 = vmatprep.subr.mxu0 0.0
    %477 = vmatpush1.msra.mxu0 0.0
    %478 = vmatprep.subr.mxu0 0.0
    %479 = vmatpush1.msra.mxu0 0.0
    %480 = vmatprep.subr.mxu0 0.0
    %481 = vmatpush1.msra.mxu0 0.0
    %482 = vmatprep.subr.mxu0 0.0
    %483 = vmatpush1.msra.mxu0 0.0
    %484 = vmatprep.subr.mxu0 0.0
    %485 = vmatpush1.msra.mxu0 0.0
    %486 = vmatprep.subr.mxu0 0.0
    %487 = vmatpush1.msra.mxu0 0.0
    %488 = vmatprep.subr.mxu0 0.0
    %489 = vmatpush1.msra.mxu0 0.0
    %490 = vmatprep.subr.mxu0 0.0
    %491 = vmatpush1.msra.mxu0 0.0
    %492 = vmatprep.subr.mxu0 0.0
    %493 = vmatpush1.msra.mxu0 0.0
    %494 = vmatprep.subr.mxu0 0.0
    %495 = vmatpush1.msra.mxu0 0.0
    %496 = vmatprep.subr.mxu0 0.0
    %497 = vmatpush1.msra.mxu0 0.0
    %498 = vmatprep.subr.mxu0 0.0
    %499 = vmatpush1.msra.mxu0 0.0
    %500 = vmatprep.subr.mxu0 0.0
    %501 = vmatpush1.msra.mxu0 0.0
    %502 = vmatprep.mubr.f32.mxu0 0.0
    %503 = vmatmul.mubr.f32.gmra.mrb[0].mxu0 %v365
    %v504 = vpop.f32.mrb[0].mxu0
    %v505 = vadd.f32 0.0, %v504
    %v506 = vpop.f32.mrb[0].mxu0
    %v507 = vadd.f32 0.0, %v506
    %508 = vdwg.mxu0
    %vm509 = vcmp.gt.f32.partialorder %v434, 0.0
    %vm510 = vcmp.gt.f32.partialorder %v436, 0.0
    %vm511 = vcmp.gt.f32.partialorder %v505, 0.0
    %vm512 = vcmp.gt.f32.partialorder %v507, 0.0
    %v513 = vmul.f32 %v434, 0.1
    %v514 = vmul.f32 %v436, 0.1
    %v515 = vmul.f32 %v505, 0.1
    %v516 = vmul.f32 %v507, 0.1
    %v517 = vsel %vm509, %v434, %v513
    %v518 = vsel %vm510, %v436, %v514
    %v519 = vsel %vm511, %v505, %v515
    %v520 = vsel %vm512, %v507, %v516
    %522 = vset.pattern.permute.xlu0 0
    %523 = vperm.xlu0 %522, %v51
    %v524 = vpop.permute.xlu0 %523
    %v526 = vmul.f32 %v517, %v524
    %v527 = vmul.f32 %v518, %v524
    %v528 = vmul.f32 %v519, %v524
    %v529 = vmul.f32 %v520, %v524
    %530 = vset.pattern.permute.xlu0 1
    %531 = vperm.xlu0 %530, %v51
    %v532 = vpop.permute.xlu0 %531
    %v534 = vadd.f32 %v526, %v532
    %v535 = vadd.f32 %v527, %v532
    %v536 = vadd.f32 %v528, %v532
    %v537 = vadd.f32 %v529, %v532
    %vm538 = vcmp.gt.f32.partialorder %v534, 0.0
    %vm539 = vcmp.gt.f32.partialorder %v535, 0.0
    %vm540 = vcmp.gt.f32.partialorder %v536, 0.0
    %vm541 = vcmp.gt.f32.partialorder %v537, 0.0
    %v542 = vmul.f32 %v534, 0.1
    %v543 = vmul.f32 %v535, 0.1
    %v544 = vmul.f32 %v536, 0.1
    %v545 = vmul.f32 %v537, 0.1
    %v546 = vsel %vm538, %v534, %v542
    %v547 = vsel %vm539, %v535, %v543
    %v548 = vsel %vm540, %v536, %v544
    %v549 = vsel %vm541, %v537, %v545
    %550 = vrot.lane.b32.xlu0 %v546, 17
    %v551 = vpop.permute.xlu0 %550
    %552 = vrot.lane.b32.xlu0 %v547, 17
    %v553 = vpop.permute.xlu0 %552
    %554 = vrot.lane.b32.xlu0 %v548, 17
    %v555 = vpop.permute.xlu0 %554
    %556 = vrot.lane.b32.xlu0 %v549, 17
    %v557 = vpop.permute.xlu0 %556
    %v558 = vsel %vm231, %v555, %v557
    %v559 = vsel %vm231, %v553, %v555
    %v560 = vsel %vm231, %v551, %v553
    %v561 = vsel %vm231, %v557, %v551
    %v562 = vmul.f32 %v561, %v68
    %v563 = vmul.f32 %v560, %v72
    %v564 = vmul.f32 %v559, %v76
    %v565 = vmul.f32 %v558, %v80
    %566 = vrot.lane.b32.xlu0 %v546, 16
    %v567 = vpop.permute.xlu0 %566
    %568 = vrot.lane.b32.xlu0 %v547, 16
    %v569 = vpop.permute.xlu0 %568
    %570 = vrot.lane.b32.xlu0 %v548, 16
    %v571 = vpop.permute.xlu0 %570
    %572 = vrot.lane.b32.xlu0 %v549, 16
    %v573 = vpop.permute.xlu0 %572
    %v574 = vsel %vm248, %v571, %v573
    %v575 = vsel %vm248, %v569, %v571
    %v576 = vsel %vm248, %v567, %v569
    %v577 = vsel %vm248, %v573, %v567
    %v578 = vmul.f32 %v577, %v84
    %v579 = vmul.f32 %v576, %v88
    %v580 = vmul.f32 %v575, %v92
    %v581 = vmul.f32 %v574, %v96
    %582 = vrot.lane.b32.xlu0 %v546, 15
    %v583 = vpop.permute.xlu0 %582
    %584 = vrot.lane.b32.xlu0 %v547, 15
    %v585 = vpop.permute.xlu0 %584
    %586 = vrot.lane.b32.xlu0 %v548, 15
    %v587 = vpop.permute.xlu0 %586
    %588 = vrot.lane.b32.xlu0 %v549, 15
    %v589 = vpop.permute.xlu0 %588
    %v590 = vsel %vm265, %v587, %v589
    %v591 = vsel %vm265, %v585, %v587
    %v592 = vsel %vm265, %v583, %v585
    %v593 = vsel %vm265, %v589, %v583
    %v594 = vmul.f32 %v593, %v100
    %v595 = vmul.f32 %v592, %v104
    %v596 = vmul.f32 %v591, %v108
    %v597 = vmul.f32 %v590, %v112
    %598 = vrot.lane.b32.xlu0 %v546, 1
    %v599 = vpop.permute.xlu0 %598
    %600 = vrot.lane.b32.xlu0 %v547, 1
    %v601 = vpop.permute.xlu0 %600
    %602 = vrot.lane.b32.xlu0 %v548, 1
    %v603 = vpop.permute.xlu0 %602
    %604 = vrot.lane.b32.xlu0 %v549, 1
    %v605 = vpop.permute.xlu0 %604
    %v606 = vsel %vm282, %v603, %v605
    %v607 = vsel %vm282, %v601, %v603
    %v608 = vsel %vm282, %v599, %v601
    %v609 = vsel %vm282, %v605, %v599
    %v610 = vmul.f32 %v609, %v116
    %v611 = vmul.f32 %v608, %v120
    %v612 = vmul.f32 %v607, %v124
    %v613 = vmul.f32 %v606, %v128
    %v614 = vmul.f32 %v546, %v132
    %v615 = vmul.f32 %v547, %v136
    %v616 = vmul.f32 %v548, %v140
    %v617 = vmul.f32 %v549, %v144
    %618 = vrot.lane.b32.xlu0 %v546, 127
    %v619 = vpop.permute.xlu0 %618
    %620 = vrot.lane.b32.xlu0 %v547, 127
    %v621 = vpop.permute.xlu0 %620
    %622 = vrot.lane.b32.xlu0 %v548, 127
    %v623 = vpop.permute.xlu0 %622
    %624 = vrot.lane.b32.xlu0 %v549, 127
    %v625 = vpop.permute.xlu0 %624
    %v626 = vsel %vm303, %v623, %v625
    %v627 = vsel %vm303, %v621, %v623
    %v628 = vsel %vm303, %v619, %v621
    %v629 = vsel %vm303, %v625, %v619
    %v630 = vmul.f32 %v628, %v148
    %v631 = vmul.f32 %v627, %v152
    %v632 = vmul.f32 %v626, %v156
    %v633 = vmul.f32 %v629, %v160
    %634 = vrot.lane.b32.xlu0 %v546, 113
    %v635 = vpop.permute.xlu0 %634
    %636 = vrot.lane.b32.xlu0 %v547, 113
    %v637 = vpop.permute.xlu0 %636
    %638 = vrot.lane.b32.xlu0 %v548, 113
    %v639 = vpop.permute.xlu0 %638
    %640 = vrot.lane.b32.xlu0 %v549, 113
    %v641 = vpop.permute.xlu0 %640
    %v642 = vsel %vm320, %v639, %v641
    %v643 = vsel %vm320, %v637, %v639
    %v644 = vsel %vm320, %v635, %v637
    %v645 = vsel %vm320, %v641, %v635
    %v646 = vmul.f32 %v644, %v164
    %v647 = vmul.f32 %v643, %v168
    %v648 = vmul.f32 %v642, %v172
    %v649 = vmul.f32 %v645, %v176
    %650 = vrot.lane.b32.xlu0 %v546, 112
    %v651 = vpop.permute.xlu0 %650
    %652 = vrot.lane.b32.xlu0 %v547, 112
    %v653 = vpop.permute.xlu0 %652
    %654 = vrot.lane.b32.xlu0 %v548, 112
    %v655 = vpop.permute.xlu0 %654
    %656 = vrot.lane.b32.xlu0 %v549, 112
    %v657 = vpop.permute.xlu0 %656
    %v658 = vsel %vm337, %v655, %v657
    %v659 = vsel %vm337, %v653, %v655
    %v660 = vsel %vm337, %v651, %v653
    %v661 = vsel %vm337, %v657, %v651
    %v662 = vmul.f32 %v660, %v180
    %v663 = vmul.f32 %v659, %v184
    %v664 = vmul.f32 %v658, %v188
    %v665 = vmul.f32 %v661, %v192
    %666 = vrot.lane.b32.xlu0 %v546, 111
    %v667 = vpop.permute.xlu0 %666
    %668 = vrot.lane.b32.xlu0 %v547, 111
    %v669 = vpop.permute.xlu0 %668
    %670 = vrot.lane.b32.xlu0 %v548, 111
    %v671 = vpop.permute.xlu0 %670
    %672 = vrot.lane.b32.xlu0 %v549, 111
    %v673 = vpop.permute.xlu0 %672
    %v674 = vsel %vm354, %v671, %v673
    %v675 = vsel %vm354, %v669, %v671
    %v676 = vsel %vm354, %v667, %v669
    %v677 = vsel %vm354, %v673, %v667
    %v678 = vmul.f32 %v676, %v196
    %v679 = vmul.f32 %v675, %v200
    %v680 = vmul.f32 %v674, %v204
    %v681 = vmul.f32 %v677, %v208
    %v683 = vsel %vm363, %v50, 0
    %685 = vmatprep.subr.mxu0 %v563
    %686 = vmatpush1.msra.mxu0 %v562
    %687 = vmatprep.subr.mxu0 %v579
    %688 = vmatpush1.msra.mxu0 %v578
    %689 = vmatprep.subr.mxu0 %v595
    %690 = vmatpush1.msra.mxu0 %v594
    %691 = vmatprep.subr.mxu0 %v611
    %692 = vmatpush1.msra.mxu0 %v610
    %693 = vmatprep.subr.mxu0 %v615
    %694 = vmatpush1.msra.mxu0 %v614
    %695 = vmatprep.subr.mxu0 %v631
    %696 = vmatpush1.msra.mxu0 %v630
    %697 = vmatprep.subr.mxu0 %v647
    %698 = vmatpush1.msra.mxu0 %v646
    %699 = vmatprep.subr.mxu0 %v663
    %700 = vmatpush1.msra.mxu0 %v662
    %701 = vmatprep.subr.mxu0 %v679
    %702 = vmatpush1.msra.mxu0 %v678
    %703 = vmatprep.subr.mxu0 0.0
    %704 = vmatpush1.msra.mxu0 0.0
    %705 = vmatprep.subr.mxu0 0.0
    %706 = vmatpush1.msra.mxu0 0.0
    %707 = vmatprep.subr.mxu0 0.0
    %708 = vmatpush1.msra.mxu0 0.0
    %709 = vmatprep.subr.mxu0 0.0
    %710 = vmatpush1.msra.mxu0 0.0
    %711 = vmatprep.subr.mxu0 0.0
    %712 = vmatpush1.msra.mxu0 0.0
    %713 = vmatprep.subr.mxu0 0.0
    %714 = vmatpush1.msra.mxu0 0.0
    %715 = vmatprep.subr.mxu0 0.0
    %716 = vmatpush1.msra.mxu0 0.0
    %717 = vmatprep.subr.mxu0 0.0
    %718 = vmatpush1.msra.mxu0 0.0
    %719 = vmatprep.subr.mxu0 0.0
    %720 = vmatpush1.msra.mxu0 0.0
    %721 = vmatprep.subr.mxu0 0.0
    %722 = vmatpush1.msra.mxu0 0.0
    %723 = vmatprep.subr.mxu0 0.0
    %724 = vmatpush1.msra.mxu0 0.0
    %725 = vmatprep.subr.mxu0 0.0
    %726 = vmatpush1.msra.mxu0 0.0
    %727 = vmatprep.subr.mxu0 0.0
    %728 = vmatpush1.msra.mxu0 0.0
    %729 = vmatprep.subr.mxu0 0.0
    %730 = vmatpush1.msra.mxu0 0.0
    %731 = vmatprep.subr.mxu0 0.0
    %732 = vmatpush1.msra.mxu0 0.0
    %733 = vmatprep.subr.mxu0 0.0
    %734 = vmatpush1.msra.mxu0 0.0
    %735 = vmatprep.subr.mxu0 0.0
    %736 = vmatpush1.msra.mxu0 0.0
    %737 = vmatprep.subr.mxu0 0.0
    %738 = vmatpush1.msra.mxu0 0.0
    %739 = vmatprep.subr.mxu0 0.0
    %740 = vmatpush1.msra.mxu0 0.0
    %741 = vmatprep.subr.mxu0 0.0
    %742 = vmatpush1.msra.mxu0 0.0
    %743 = vmatprep.subr.mxu0 0.0
    %744 = vmatpush1.msra.mxu0 0.0
    %745 = vmatprep.subr.mxu0 0.0
    %746 = vmatpush1.msra.mxu0 0.0
    %747 = vmatprep.subr.mxu0 0.0
    %748 = vmatpush1.msra.mxu0 0.0
    %749 = vmatprep.mubr.f32.mxu0 0.0
    %750 = vmatmul.mubr.f32.gmra.mrb[0].mxu0 %v683
    %v751 = vpop.f32.mrb[0].mxu0
    %v752 = vadd.f32 0.0, %v751
    %v753 = vpop.f32.mrb[0].mxu0
    %v754 = vadd.f32 0.0, %v753
    %755 = vdwg.mxu0
    %756 = vmatprep.subr.mxu0 %v565
    %757 = vmatpush1.msra.mxu0 %v564
    %758 = vmatprep.subr.mxu0 %v581
    %759 = vmatpush1.msra.mxu0 %v580
    %760 = vmatprep.subr.mxu0 %v597
    %761 = vmatpush1.msra.mxu0 %v596
    %762 = vmatprep.subr.mxu0 %v613
    %763 = vmatpush1.msra.mxu0 %v612
    %764 = vmatprep.subr.mxu0 %v617
    %765 = vmatpush1.msra.mxu0 %v616
    %766 = vmatprep.subr.mxu0 %v633
    %767 = vmatpush1.msra.mxu0 %v632
    %768 = vmatprep.subr.mxu0 %v649
    %769 = vmatpush1.msra.mxu0 %v648
    %770 = vmatprep.subr.mxu0 %v665
    %771 = vmatpush1.msra.mxu0 %v664
    %772 = vmatprep.subr.mxu0 %v681
    %773 = vmatpush1.msra.mxu0 %v680
    %774 = vmatprep.subr.mxu0 0.0
    %775 = vmatpush1.msra.mxu0 0.0
    %776 = vmatprep.subr.mxu0 0.0
    %777 = vmatpush1.msra.mxu0 0.0
    %778 = vmatprep.subr.mxu0 0.0
    %779 = vmatpush1.msra.mxu0 0.0
    %780 = vmatprep.subr.mxu0 0.0
    %781 = vmatpush1.msra.mxu0 0.0
    %782 = vmatprep.subr.mxu0 0.0
    %783 = vmatpush1.msra.mxu0 0.0
    %784 = vmatprep.subr.mxu0 0.0
    %785 = vmatpush1.msra.mxu0 0.0
    %786 = vmatprep.subr.mxu0 0.0
    %787 = vmatpush1.msra.mxu0 0.0
    %788 = vmatprep.subr.mxu0 0.0
    %789 = vmatpush1.msra.mxu0 0.0
    %790 = vmatprep.subr.mxu0 0.0
    %791 = vmatpush1.msra.mxu0 0.0
    %792 = vmatprep.subr.mxu0 0.0
    %793 = vmatpush1.msra.mxu0 0.0
    %794 = vmatprep.subr.mxu0 0.0
    %795 = vmatpush1.msra.mxu0 0.0
    %796 = vmatprep.subr.mxu0 0.0
    %797 = vmatpush1.msra.mxu0 0.0
    %798 = vmatprep.subr.mxu0 0.0
    %799 = vmatpush1.msra.mxu0 0.0
    %800 = vmatprep.subr.mxu0 0.0
    %801 = vmatpush1.msra.mxu0 0.0
    %802 = vmatprep.subr.mxu0 0.0
    %803 = vmatpush1.msra.mxu0 0.0
    %804 = vmatprep.subr.mxu0 0.0
    %805 = vmatpush1.msra.mxu0 0.0
    %806 = vmatprep.subr.mxu0 0.0
    %807 = vmatpush1.msra.mxu0 0.0
    %808 = vmatprep.subr.mxu0 0.0
    %809 = vmatpush1.msra.mxu0 0.0
    %810 = vmatprep.subr.mxu0 0.0
    %811 = vmatpush1.msra.mxu0 0.0
    %812 = vmatprep.subr.mxu0 0.0
    %813 = vmatpush1.msra.mxu0 0.0
    %814 = vmatprep.subr.mxu0 0.0
    %815 = vmatpush1.msra.mxu0 0.0
    %816 = vmatprep.subr.mxu0 0.0
    %817 = vmatpush1.msra.mxu0 0.0
    %818 = vmatprep.subr.mxu0 0.0
    %819 = vmatpush1.msra.mxu0 0.0
    %820 = vmatprep.mubr.f32.mxu0 0.0
    %821 = vmatmul.mubr.f32.gmra.mrb[0].mxu0 %v683
    %v822 = vpop.f32.mrb[0].mxu0
    %v823 = vadd.f32 0.0, %v822
    %v824 = vpop.f32.mrb[0].mxu0
    %v825 = vadd.f32 0.0, %v824
    %826 = vdwg.mxu0
    %vm827 = vcmp.gt.f32.partialorder %v752, 0.0
    %vm828 = vcmp.gt.f32.partialorder %v754, 0.0
    %vm829 = vcmp.gt.f32.partialorder %v823, 0.0
    %vm830 = vcmp.gt.f32.partialorder %v825, 0.0
    %v831 = vmul.f32 %v752, 0.1
    %v832 = vmul.f32 %v754, 0.1
    %v833 = vmul.f32 %v823, 0.1
    %v834 = vmul.f32 %v825, 0.1
    %v835 = vsel %vm827, %v752, %v831
    %v836 = vsel %vm828, %v754, %v832
    %v837 = vsel %vm829, %v823, %v833
    %v838 = vsel %vm830, %v825, %v834
    %839 = vset.pattern.permute.xlu0 2
    %840 = vperm.xlu0 %839, %v51
    %v841 = vpop.permute.xlu0 %840
    %v843 = vmul.f32 %v835, %v841
    %v844 = vmul.f32 %v836, %v841
    %v845 = vmul.f32 %v837, %v841
    %v846 = vmul.f32 %v838, %v841
    %847 = vset.pattern.permute.xlu0 3
    %848 = vperm.xlu0 %847, %v51
    %v849 = vpop.permute.xlu0 %848
    %v851 = vadd.f32 %v843, %v849
    %v852 = vadd.f32 %v844, %v849
    %v853 = vadd.f32 %v845, %v849
    %v854 = vadd.f32 %v846, %v849
    %v855 = vadd.f32 %v851, %v60
    %v856 = vadd.f32 %v852, %v61
    %v857 = vadd.f32 %v853, %v63
    %v858 = vadd.f32 %v854, %v64
    %859 = vst [vmem:[#allocation7] sm:$0xff] %v855
    %860 = vst [vmem:[#allocation7 + $0x8] sm:$0xff] %v856
    %s861 = scalar_lea.vmem [#allocation7], 16
    %862 = vst [vmem:[%s861] sm:$0xff] %v857
    %863 = vst [vmem:[%s861 + $0x8] sm:$0xff] %v858
    // Predicated region
    $region30: #{tpu_custom_call.1} parent=1 // pred_check
      _
    $region31: #{tpu_custom_call.1} parent=1 // pred_check_branch
      %865 = sbr.rel (0) target = $region33
    $region32: #{tpu_custom_call.1} parent=1 // pred_region
      %s867 = ssub.s32 512, 512
      %868 = vsyncadd [#allocation4], %s867
      %s869 = sshll.u32 [#allocation7], 4
      %s870 = int_to_ptr.vmem [resolvable:$true] %s869
      %875 = dma.vmem_to_hbm [thread:$0]  %s870, 512, %s5, [#allocation4], 256, 256, 16
    $region33: #{tpu_custom_call.1} parent=1 // pred_fallthru
      _
    // Predicated region
    $region34: #{tpu_custom_call.1} parent=1 // pred_check
      _
    $region35: #{tpu_custom_call.1} parent=1 // pred_check_branch
      %877 = sbr.rel (0) target = $region37
    $region36: #{tpu_custom_call.1} parent=1 // pred_region
      %878 = dma.done [#allocation4], 512
    $region37: #{tpu_custom_call.1} parent=1 // pred_fallthru
      _
    %879 = vsyncpa [#allocation3], 1
    %880 = vsyncpa [#allocation6], 1
    %881 = vsyncpa [#allocation4], 1

</llo_original>
